<compile_context>
chip_gen: v7x
topology: tpu7x:2x2x1
jax: 0.10.0
libtpu: 0.0.40
codegen_flags: <defaults>
</compile_context>

<pallas_src>
import functools

import jax
import jax.numpy as jnp
from jax import lax
from jax.experimental import pallas as pl
from jax.experimental.pallas import tpu as pltpu

LANE = 128     # all padded feature dims (Denc, A, E, Hd, V) -> one lane tile
SUB = 8        # batch padded to one sublane group
ENC_TILE = 256 # encoder row tile (matches 256-wide MXU on v6e/v7x)


# ----------------------------- encoder kernel ------------------------------ #
def _encoder_kernel(x_ref, w_ref, b_ref, o_ref):
    y = jnp.dot(x_ref[...], w_ref[...], preferred_element_type=jnp.float32)
    y = y + b_ref[...]
    o_ref[...] = jnp.maximum(y, 0.0).astype(o_ref.dtype)


def encoder_forward(imgs, w_conv, b_conv):
    """1x1 conv + ReLU as a row-tiled matmul.  NCHW -> (B, H*W, Dp) bf16."""
    B, C, H, W = imgs.shape
    Dp = w_conv.shape[1]
    rows = B * H * W
    # NCHW -> NHWC flat rows, cast to bf16 *before* the call (halves HBM read).
    x = jnp.transpose(imgs, (0, 2, 3, 1)).reshape(rows, C).astype(jnp.bfloat16)
    rows_p = ((rows + ENC_TILE - 1) // ENC_TILE) * ENC_TILE
    if rows_p != rows:
        x = jnp.pad(x, ((0, rows_p - rows), (0, 0)))
    out = pl.pallas_call(
        _encoder_kernel,
        out_shape=jax.ShapeDtypeStruct((rows_p, Dp), jnp.bfloat16),
        grid_spec=pltpu.PrefetchScalarGridSpec(
            num_scalar_prefetch=0,
            grid=(rows_p // ENC_TILE,),
            in_specs=[
                pl.BlockSpec((ENC_TILE, C), lambda i: (i, 0)),
                pl.BlockSpec((C, Dp), lambda i: (0, 0)),
                pl.BlockSpec((1, Dp), lambda i: (0, 0)),
            ],
            out_specs=pl.BlockSpec((ENC_TILE, Dp), lambda i: (i, 0)),
        ),
        compiler_params=pltpu.CompilerParams(
            dimension_semantics=("parallel",),
            vmem_limit_bytes=32 << 20),
    )(x, w_conv, b_conv)
    return out[:rows].reshape(B, H * W, Dp)


# ------------------------ fused greedy-decode kernel ------------------------ #
def _decode_kernel(enc_ref, emb_ref,
                   w_init_ref, b_init_ref,
                   wea_ref, bea_ref,
                   whg_ref, bhg_ref,
                   wfa_ref, bfa_ref,
                   wl_ref, bl_ref, wfc_ref, bfc_ref,
                   tok_ref,
                   att1_scr,
                   *, start_id, max_length):
    f32, bf16 = jnp.float32, jnp.bfloat16
    Bp, P, Dp = enc_ref.shape
    Vp, Ep = emb_ref.shape
    Hp = b_init_ref.shape[1] // 2
    Ap = bea_ref.shape[1]

    # ---- one-time init: fused [init_h | init_c] matmul + cached att1 ----
    enc0 = enc_ref[...]                                          # (Bp,P,Dp) bf16
    mean_b = jnp.mean(enc0.astype(f32), axis=1).astype(bf16)     # (Bp,Dp)
    hc = (jnp.dot(mean_b, w_init_ref[...], preferred_element_type=f32)
          + b_init_ref[...])                                     # (Bp,2*Hp)
    h0, c0 = hc[:, :Hp], hc[:, Hp:]
    att1 = jnp.dot(enc0.reshape(Bp * P, Dp), wea_ref[...],
                   preferred_element_type=f32)
    att1_scr[...] = att1.reshape(Bp, P, Ap) + bea_ref[...]

    w_fa = wfa_ref[...]                                          # (1,Ap) f32, VPU-applied
    b_fa = bfa_ref[...]                                          # (1,1)  f32
    iota_v = lax.broadcasted_iota(jnp.int32, (Bp, Vp), 1)
    ids0 = jnp.full((Bp, 1), start_id, jnp.int32)

    def step(t, carry):
        h, c, ids = carry
        h_b = h.astype(bf16)

        # embedding lookup: one-hot @ table (padded vocab is one lane tile).
        # TODO(synk): at production vocab sizes replace with a scalar-indexed
        # DMA gather of rows from an HBM-resident table (ids in SMEM).
        onehot = (iota_v == ids).astype(bf16)
        emb = jnp.dot(onehot, emb_ref[...], preferred_element_type=f32)   # (Bp,Ep)

        # h-dependent attention term + f_beta gate share the same LHS:
        # ONE fused matmul with N = Ap + Dp = 256.
        hg = jnp.dot(h_b, whg_ref[...], preferred_element_type=f32) + bhg_ref[...]
        att2 = hg[:, :Ap]
        gate = jax.nn.sigmoid(hg[:, Ap:])

        # full_att projection on the VPU (a 1-row MXU matmul is pure fill/drain)
        att_pre = jnp.maximum(att1_scr[...] + att2[:, None, :], 0.0)      # (Bp,P,Ap)
        att = jnp.sum(att_pre * w_fa, axis=-1, keepdims=True) + b_fa      # (Bp,P,1)

        # exact softmax over pixels (sublane axis) — review correctness note
        m = jnp.max(att, axis=1, keepdims=True)
        e = jnp.exp(att - m)
        alpha = e / jnp.sum(e, axis=1, keepdims=True)                     # (Bp,P,1)

        # attention-weighted encoding as a VPU/XLU weighted sum (MXU stays free)
        awe = jnp.sum(alpha * enc_ref[...].astype(f32), axis=1)           # (Bp,Dp)
        awe = gate * awe

        # fused LSTMCell: [emb | awe | h] @ [W_ih ; W_hh]  (gate order i,f,g,o)
        xcat = jnp.concatenate([emb.astype(bf16), awe.astype(bf16), h_b], axis=1)
        gates = jnp.dot(xcat, wl_ref[...], preferred_element_type=f32) + bl_ref[...]
        i_g = jax.nn.sigmoid(gates[:, 0 * Hp:1 * Hp])
        f_g = jax.nn.sigmoid(gates[:, 1 * Hp:2 * Hp])
        g_g = jnp.tanh(gates[:, 2 * Hp:3 * Hp])
        o_g = jax.nn.sigmoid(gates[:, 3 * Hp:4 * Hp])
        c_new = f_g * c + i_g * g_g
        h_new = o_g * jnp.tanh(c_new)

        # vocab scores + in-kernel greedy argmax (padded vocab lanes: -1e30 bias)
        # TODO(synk): at production vocab sizes stream w_fc from HBM in lane
        # chunks with a running (max, argmax) instead of full (Bp, Vp) scores.
        scores = (jnp.dot(h_new.astype(bf16), wfc_ref[...],
                          preferred_element_type=f32) + bfc_ref[...])      # (Bp,Vp)
        m_s = jnp.max(scores, axis=-1, keepdims=True)
        next_ids = jnp.min(jnp.where(scores == m_s, iota_v, Vp),
                           axis=-1, keepdims=True)                         # (Bp,1) i32

        tok_ref[t] = jnp.broadcast_to(next_ids, (Bp, tok_ref.shape[2]))
        return h_new, c_new, next_ids

    lax.fori_loop(0, max_length, step, (h0, c0, ids0))


def greedy_decode(enc_p, pp, start_id, max_length):
    Bp, P, Dp = enc_p.shape
    Vp, Ep = pp["emb"].shape
    Hp = pp["b_init"].shape[1] // 2
    Ap = pp["w_enc_att"].shape[1]
    T = max_length
    c2 = lambda i: (0, 0)
    c3 = lambda i: (0, 0, 0)

    operands = (enc_p, pp["emb"], pp["w_init"], pp["b_init"],
                pp["w_enc_att"], pp["b_enc_att"], pp["w_hg"], pp["b_hg"],
                pp["w_full_att"], pp["b_full_att"],
                pp["w_lstm"], pp["b_lstm"], pp["w_fc"], pp["b_fc"])
    # resident-set-derived scoped VMEM request (x2 for default double
    # buffering, + scratch + f32 intermediates headroom), clamped to the
    # smallest physical VMEM across generations (v7x: 64 MiB).
    resident = sum(int(a.size) * a.dtype.itemsize for a in operands)
    scratch = Bp * P * Ap * 4
    out_bytes = T * Bp * LANE * 4
    vmem_limit = int(min(max(2 * (resident + out_bytes) + scratch + (8 << 20),
                             32 << 20), 64 << 20))

    grid_spec = pltpu.PrefetchScalarGridSpec(
        num_scalar_prefetch=0,
        grid=(1,),
        in_specs=[
            pl.BlockSpec((Bp, P, Dp), c3),                                  # encoder_out
            pl.BlockSpec((Vp, Ep), c2),                                     # embedding table
            pl.BlockSpec((Dp, 2 * Hp), c2), pl.BlockSpec((1, 2 * Hp), c2),  # fused init_h|init_c
            pl.BlockSpec((Dp, Ap), c2), pl.BlockSpec((1, Ap), c2),          # encoder_att
            pl.BlockSpec((Hp, Ap + Dp), c2), pl.BlockSpec((1, Ap + Dp), c2),# fused dec_att|f_beta
            pl.BlockSpec((1, Ap), c2), pl.BlockSpec((1, 1), c2),            # full_att (VPU)
            pl.BlockSpec((Ep + Dp + Hp, 4 * Hp), c2),                       # fused LSTM W
            pl.BlockSpec((1, 4 * Hp), c2),                                  # fused LSTM b
            pl.BlockSpec((Hp, Vp), c2), pl.BlockSpec((1, Vp), c2),          # fc
        ],
        out_specs=pl.BlockSpec((T, Bp, LANE), lambda i: (0, 0, 0)),
        scratch_shapes=[
            pltpu.VMEM((Bp, P, Ap), jnp.float32),   # cached att1 = enc @ W_enc_att + b
        ],
    )
    toks = pl.pallas_call(
        functools.partial(_decode_kernel, start_id=start_id, max_length=max_length),
        grid_spec=grid_spec,
        out_shape=jax.ShapeDtypeStruct((T, Bp, LANE), jnp.int32),
        compiler_params=pltpu.CompilerParams(
            dimension_semantics=("arbitrary",),
            vmem_limit_bytes=vmem_limit),
    )(enc_p, pp["emb"], pp["w_init"], pp["b_init"],
      pp["w_enc_att"], pp["b_enc_att"], pp["w_hg"], pp["b_hg"],
      pp["w_full_att"], pp["b_full_att"],
      pp["w_lstm"], pp["b_lstm"], pp["w_fc"], pp["b_fc"])
    return toks[:, :, 0]                                                   # (T, Bp)


# ----------------------- parameter padding / fusion ------------------------- #
def _pad_to(x, shape, fill=0.0):
    pads = [(0, s - d) for d, s in zip(x.shape, shape)]
    return jnp.pad(x, pads, constant_values=fill)


def _prepare_tpu_params(p):
    """Zero-pad feature dims to 128 lanes, fuse shared-LHS weights
    ([init_h|init_c], [dec_att|f_beta], LSTM), cast MXU weights to bf16
    (biases and the VPU-applied full_att weight stay f32).  Padding is exact:
    padded lanes stay identically zero through the whole recurrence."""
    f32, bf16 = jnp.float32, jnp.bfloat16
    C, Denc = p["w_conv"].shape
    Hd = p["w_hh"].shape[0]
    A = p["w_dec_att"].shape[1]
    V, E = p["emb_table"].shape
    assert max(Denc, A, E, Hd, V) <= LANE
    Dp = Ap = Ep = Hp = Vp = LANE

    w_init_h = _pad_to(p["w_init_h"], (Dp, Hp))
    w_init_c = _pad_to(p["w_init_c"], (Dp, Hp))
    b_init_h = _pad_to(p["b_init_h"], (1, Hp))
    b_init_c = _pad_to(p["b_init_c"], (1, Hp))
    w_dec_att = _pad_to(p["w_dec_att"], (Hp, Ap))
    b_dec_att = _pad_to(p["b_dec_att"], (1, Ap))
    w_fbeta = _pad_to(p["w_fbeta"], (Hp, Dp))
    b_fbeta = _pad_to(p["b_fbeta"], (1, Dp))

    pp = {
        "w_conv": _pad_to(p["w_conv"], (C, Dp)).astype(bf16),
        "b_conv": _pad_to(p["b_conv"], (1, Dp)).astype(f32),
        # fused [init_h | init_c]: one mean_b @ W matmul with N = 2*Hp
        "w_init": jnp.concatenate([w_init_h, w_init_c], axis=1).astype(bf16),
        "b_init": jnp.concatenate([b_init_h, b_init_c], axis=1).astype(f32),
        "w_enc_att": _pad_to(p["w_enc_att"], (Dp, Ap)).astype(bf16),
        "b_enc_att": _pad_to(p["b_enc_att"], (1, Ap)).astype(f32),
        # fused [dec_att | f_beta]: one h @ W matmul with N = Ap + Dp
        "w_hg": jnp.concatenate([w_dec_att, w_fbeta], axis=1).astype(bf16),
        "b_hg": jnp.concatenate([b_dec_att, b_fbeta], axis=1).astype(f32),
        # full_att is applied on the VPU (multiply + lane reduce) -> stays f32
        "w_full_att": _pad_to(p["w_full_att"], (1, Ap)).astype(f32),
        "b_full_att": p["b_full_att"].astype(f32),
        "emb": _pad_to(p["emb_table"], (Vp, Ep)).astype(bf16),
        "w_fc": _pad_to(p["w_fc"], (Hp, Vp)).astype(bf16),
        # padded vocab lanes get a huge negative bias so argmax never picks them
        "b_fc": jnp.full((1, Vp), -1e30, f32).at[0, :V].set(p["b_fc"][0].astype(f32)),
    }

    # fused LSTM weight: rows = [emb | awe | h], columns = 4 gate blocks (i,f,g,o)
    w_ih, w_hh = p["w_ih"], p["w_hh"]
    b_sum = (p["b_ih"] + p["b_hh"])[0]
    w_l = jnp.zeros((Ep + Dp + Hp, 4 * Hp), f32)
    b_l = jnp.zeros((1, 4 * Hp), f32)
    for g in range(4):
        src = slice(g * Hd, (g + 1) * Hd)
        dst = slice(g * Hp, g * Hp + Hd)
        w_l = w_l.at[0:E, dst].set(w_ih[0:E, src])
        w_l = w_l.at[Ep:Ep + Denc, dst].set(w_ih[E:E + Denc, src])
        w_l = w_l.at[Ep + Dp:Ep + Dp + Hd, dst].set(w_hh[:, src])
        b_l = b_l.at[0, dst].set(b_sum[src])
    pp["w_lstm"] = w_l.astype(bf16)
    pp["b_lstm"] = b_l
    return pp


# ------------------------------- CaptionModel ------------------------------- #
class CaptionModel:
    def __init__(self, params, word_map, max_length):
        self.word_map = word_map
        self.max_length = max_length
        self.pp = _prepare_tpu_params(params)

    def forward(self, imgs):
        B = imgs.shape[0]
        enc = encoder_forward(imgs, self.pp["w_conv"], self.pp["b_conv"])  # (B,P,Dp) bf16
        Bp = max(SUB, ((B + SUB - 1) // SUB) * SUB)
        enc_p = jnp.pad(enc, ((0, Bp - B), (0, 0), (0, 0)))                # inert zero rows

        toks = greedy_decode(enc_p, self.pp,
                             self.word_map["<start>"], self.max_length)    # (T, Bp)
        toks = toks[:, :B].T                                               # (B, T)
        start_col = jnp.full((B, 1), self.word_map["<start>"], dtype=jnp.int32)
        seqs = jnp.concatenate([start_col, toks], axis=1)                  # (B, T+1)

        # single host sync at the very end: trim at sample 0's first '<end>'
        # (same returned prefix as the PyTorch per-step break on sample 0).
        row0 = jax.device_get(toks[0])
        end_id = self.word_map["<end>"]
        for i in range(self.max_length):
            if int(row0[i]) == end_id:
                return seqs[:, :i + 2]
        return seqs


# --------------------------------- main ------------------------------------- #
def _make_params(key, C, Denc, A, E, Hd, V):
    ks = jax.random.split(key, 16)
    s = 0.1
    f32 = jnp.float32
    return {
        "w_conv": (jax.random.normal(ks[0], (C, Denc)) * s).astype(f32),
        "b_conv": (jax.random.normal(ks[1], (1, Denc)) * s).astype(f32),
        "w_init_h": (jax.random.normal(ks[2], (Denc, Hd)) * s).astype(f32),
        "b_init_h": (jax.random.normal(ks[3], (1, Hd)) * s).astype(f32),
        "w_init_c": (jax.random.normal(ks[4], (Denc, Hd)) * s).astype(f32),
        "b_init_c": (jax.random.normal(ks[5], (1, Hd)) * s).astype(f32),
        "w_enc_att": (jax.random.normal(ks[6], (Denc, A)) * s).astype(f32),
        "b_enc_att": jnp.zeros((1, A), f32),
        "w_dec_att": (jax.random.normal(ks[7], (Hd, A)) * s).astype(f32),
        "b_dec_att": jnp.zeros((1, A), f32),
        "w_full_att": (jax.random.normal(ks[8], (1, A)) * s).astype(f32),
        "b_full_att": jnp.zeros((1, 1), f32),
        "w_fbeta": (jax.random.normal(ks[9], (Hd, Denc)) * s).astype(f32),
        "b_fbeta": jnp.zeros((1, Denc), f32),
        "w_ih": (jax.random.normal(ks[10], (E + Denc, 4 * Hd)) * s).astype(f32),
        "b_ih": (jax.random.normal(ks[11], (1, 4 * Hd)) * s).astype(f32),
        "w_hh": (jax.random.normal(ks[12], (Hd, 4 * Hd)) * s).astype(f32),
        "b_hh": (jax.random.normal(ks[13], (1, 4 * Hd)) * s).astype(f32),
        "w_fc": (jax.random.normal(ks[14], (Hd, V)) * s).astype(f32),
        "b_fc": (jax.random.normal(ks[15], (1, V)) * s).astype(f32),
        "emb_table": (jax.random.normal(jax.random.fold_in(key, 99), (V, E)) * s).astype(f32),
    }


if __name__ == "__main__":
    B, C, H, W = 2, 4, 16, 16
    Denc, A, E, Hd, V = 32, 32, 32, 32, 16
    max_length = 8
    word_map = {"<start>": 1, "<end>": 2, "<pad>": 0}

    key = jax.random.PRNGKey(0)
    k_img, k_par = jax.random.split(key)
    imgs = jax.random.normal(k_img, (B, C, H, W), dtype=jnp.float32)
    params = _make_params(k_par, C, Denc, A, E, Hd, V)

    model = CaptionModel(params, word_map, max_length)
    seqs = model.forward(imgs)
    seqs = jax.block_until_ready(seqs)
    assert seqs.shape[0] == B and seqs.shape[1] >= 2
    print("KERNEL_OK")
</pallas_src>

<mosaic_0001>
module attributes {stable_mosaic.version = 11 : i64} {
  func.func @_encoder_kernel(%arg0: i32, %arg1: memref<256x4xbf16, #tpu.memory_space<vmem>>, %arg2: memref<4x128xbf16, #tpu.memory_space<vmem>>, %arg3: memref<1x128xf32, #tpu.memory_space<vmem>>, %arg4: memref<256x128xbf16, #tpu.memory_space<vmem>>) attributes {dimension_semantics = [#tpu.dimension_semantics<parallel>], iteration_bounds = array<i64: 2>, scalar_prefetch = 0 : i64, scratch_operands = 0 : i64, tpu.core_type = #tpu.core_type<tc>, window_params = [{transform_indices = @transform_0, window_bounds = array<i64: 256, 4>}, {pipeline_mode = #tpu.pipeline_mode<synchronous>, transform_indices = @transform_1, window_bounds = array<i64: 4, 128>}, {pipeline_mode = #tpu.pipeline_mode<synchronous>, transform_indices = @transform_2, window_bounds = array<i64: 1, 128>}, {transform_indices = @transform_3, window_bounds = array<i64: 256, 128>}]} {
    %c0 = arith.constant 0 : index
    %c0_0 = arith.constant 0 : index
    %0 = vector.load %arg1[%c0, %c0_0] : memref<256x4xbf16, #tpu.memory_space<vmem>>, vector<256x4xbf16>
    %c0_1 = arith.constant 0 : index
    %c0_2 = arith.constant 0 : index
    %1 = vector.load %arg2[%c0_1, %c0_2] : memref<4x128xbf16, #tpu.memory_space<vmem>>, vector<4x128xbf16>
    %cst = arith.constant dense<0.000000e+00> : vector<256x128xf32>
    %2 = tpu.matmul %0, %1, %cst {dimension_numbers = #tpu.dot_dimension_numbers<[1], [0], [0], [1], [0, 0, 1, 1], [], []>} : vector<256x4xbf16>, vector<4x128xbf16>, vector<256x128xf32> -> vector<256x128xf32>
    %c0_3 = arith.constant 0 : index
    %c0_4 = arith.constant 0 : index
    %3 = vector.load %arg3[%c0_3, %c0_4] : memref<1x128xf32, #tpu.memory_space<vmem>>, vector<1x128xf32>
    %4 = vector.broadcast %3 : vector<1x128xf32> to vector<256x128xf32>
    %5 = arith.addf %2, %4 : vector<256x128xf32>
    %cst_5 = arith.constant 0.000000e+00 : f32
    %6 = vector.broadcast %cst_5 : f32 to vector<256x128xf32>
    %7 = arith.maximumf %5, %6 : vector<256x128xf32>
    %8 = arith.truncf %7 : vector<256x128xf32> to vector<256x128xbf16>
    %c0_6 = arith.constant 0 : index
    %c0_7 = arith.constant 0 : index
    %9 = vector.load %arg4[%c0_6, %c0_7] : memref<256x128xbf16, #tpu.memory_space<vmem>>, vector<256x128xbf16>
    tpu.vector_store %arg4[%c0_6, %c0_7], %8 {strides = array<i32>} : memref<256x128xbf16, #tpu.memory_space<vmem>>, vector<256x128xbf16>,
    return
  }
  func.func @transform_0(%arg0: i32) -> (i32, i32) {
    %c0_i32 = arith.constant 0 : i32
    %c0_i32_0 = arith.constant 0 : i32
    return %arg0, %c0_i32 : i32, i32
  }
  func.func @transform_1(%arg0: i32) -> (i32, i32) {
    %c0_i32 = arith.constant 0 : i32
    %c0_i32_0 = arith.constant 0 : i32
    %c0_i32_1 = arith.constant 0 : i32
    return %c0_i32, %c0_i32_0 : i32, i32
  }
  func.func @transform_2(%arg0: i32) -> (i32, i32) {
    %c0_i32 = arith.constant 0 : i32
    %c0_i32_0 = arith.constant 0 : i32
    %c0_i32_1 = arith.constant 0 : i32
    return %c0_i32, %c0_i32_0 : i32, i32
  }
  func.func @transform_3(%arg0: i32) -> (i32, i32) {
    %c0_i32 = arith.constant 0 : i32
    %c0_i32_0 = arith.constant 0 : i32
    return %arg0, %c0_i32 : i32, i32
  }
}

</mosaic_0001>

<llo_original>
// kernel: tpu_custom_call.1
$region0: #{tpu_custom_call.1}
  #allocation0 [shape = 'u32[]', space=smem, size = 0x4, offset = 0x4, fixed_abs, tag = 'smem constant byte address 0x4 - core index']
  #allocation1 [shape = 'u32[144,128]{1,0:T(1,128)}', space=vmem, size = 0x12000, scoped, tag = 'internal scratch']
  %s0 = inlined_call_operand.vmem [shape: bf16[512,4], index: 0, kind: input, shape index: {}]
  %s1 = inlined_call_operand.vmem [shape: bf16[4,128], index: 1, kind: input, shape index: {}]
  %s2 = inlined_call_operand.vmem [shape: f32[1,128], index: 2, kind: input, shape index: {}]
  %s3 = inlined_call_operand.hbm [shape: bf16[512,128], index: 3, kind: output, shape index: {}]
  %s4 = sld [smem:[#allocation0]]
  $region45: #{tpu_custom_call.1} parent=0
    _
  %s6 = ssub.s32 1, %s4
  %s7 = scalar_select 0, %s6, %s4
  $region1: #{tpu_custom_call.1} parent=0
    #allocation2 [shape = 'u8[131072]{0}', space=vmem, size = 0x20000, scoped, tag = 'output window, operand 0']
    #allocation3 [shape = 's32[2]{0}', space=sflag, size = 0x8, scoped, tag = 'scoped memory for tpu_custom_call.1']
    %8 = vsyncpa [#allocation3], 0
    %s9 = scalar_lea.sflag [#allocation3], 1
    %10 = vsyncpa %s9, 0
    loop: start=0, step=1, limit=4
    $region2: #{tpu_custom_call.1} parent=1 // loop_pre_header
      _
    $region3: #{tpu_custom_call.1} parent=1 // loop_header
      %s12 = sphi 0, %s16
      %p13 = scmp.ge.s32.totalorder %s12, 4
      %s22 = sphi 0, %s24
      %s25 = sphi 0, %s22
      %s26 = sphi 0, %s25
      %s42 = sphi 0, %s26
      %s46 = sphi 0, %s46
      %s48 = sphi 0, %s46
      %s49 = sphi 0, %s48
      %s63 = sphi 0, %s49
      %s67 = sphi 0, %s67
      %s69 = sphi 0, %s67
      %s70 = sphi 0, %s69
      %s84 = sphi 0, %s70
      %s90 = sphi 0, %s92
      %s93 = sphi 0, %s90
      %s94 = sphi 0, %s93
      %s110 = sphi 0, %s94
    $region4: #{tpu_custom_call.1} parent=1 // loop_header_branch
      %15 = sbr.rel (%p13) target = $region8
    $region5: #{tpu_custom_call.1} parent=1 // loop_body
      %s17 = ssub.s32 %s12, 1
      %s18 = ssub.s32 %s12, 2
      %s19 = sadd.s32 %s12, 1
      %s20 = ssub.s32 %s12, %s19
      %p21 = scmp.eq.s32.totalorder %s20, 0
      %s23 = sadd.s32 %s22, 1
      %s24 = scalar_select %p21, %s22, %s23
      %p27 = pneg %p21
      %p28 = scmp.eq.s32.totalorder %s12, 1
      %p29 = por %p27, %p28
      %p30 = scmp.ne.s32.totalorder %s22, %s25
      %p31 = scmp.eq.s32.totalorder %s12, 0
      %p32 = por %p30, %p31
      %p33 = scmp.ne.s32.totalorder %s22, %s25
      %p34 = scmp.eq.s32.totalorder %s17, 1
      %p35 = por %p33, %p34
      %p36 = scmp.ne.s32.totalorder %s25, %s26
      %p37 = scmp.eq.s32.totalorder %s17, 0
      %p38 = por %p36, %p37
      %p39 = scmp.ne.s32.totalorder %s25, %s26
      %p40 = scmp.eq.s32.totalorder %s18, 1
      %p41 = por %p39, %p40
      %p43 = scmp.ne.s32.totalorder %s26, %s42
      %p44 = scmp.eq.s32.totalorder %s18, 0
      %p45 = por %p43, %p44
      %s47 = sadd.s32 %s46, 1
      %p50 = scmp.eq.s32.totalorder %s12, 1
      %p51 = scmp.ne.s32.totalorder %s46, %s48
      %p52 = scmp.eq.s32.totalorder %s12, 0
      %p53 = por %p51, %p52
      %p54 = scmp.ne.s32.totalorder %s46, %s48
      %p55 = scmp.eq.s32.totalorder %s17, 1
      %p56 = por %p54, %p55
      %p57 = scmp.ne.s32.totalorder %s48, %s49
      %p58 = scmp.eq.s32.totalorder %s17, 0
      %p59 = por %p57, %p58
      %p60 = scmp.ne.s32.totalorder %s48, %s49
      %p61 = scmp.eq.s32.totalorder %s18, 1
      %p62 = por %p60, %p61
      %p64 = scmp.ne.s32.totalorder %s49, %s63
      %p65 = scmp.eq.s32.totalorder %s18, 0
      %p66 = por %p64, %p65
      %s68 = sadd.s32 %s67, 1
      %p71 = scmp.eq.s32.totalorder %s12, 1
      %p72 = scmp.ne.s32.totalorder %s67, %s69
      %p73 = scmp.eq.s32.totalorder %s12, 0
      %p74 = por %p72, %p73
      %p75 = scmp.ne.s32.totalorder %s67, %s69
      %p76 = scmp.eq.s32.totalorder %s17, 1
      %p77 = por %p75, %p76
      %p78 = scmp.ne.s32.totalorder %s69, %s70
      %p79 = scmp.eq.s32.totalorder %s17, 0
      %p80 = por %p78, %p79
      %p81 = scmp.ne.s32.totalorder %s69, %s70
      %p82 = scmp.eq.s32.totalorder %s18, 1
      %p83 = por %p81, %p82
      %p85 = scmp.ne.s32.totalorder %s70, %s84
      %p86 = scmp.eq.s32.totalorder %s18, 0
      %p87 = por %p85, %p86
      %s88 = ssub.s32 %s12, %s19
      %p89 = scmp.eq.s32.totalorder %s88, 0
      %s91 = sadd.s32 %s90, 1
      %s92 = scalar_select %p89, %s90, %s91
      %p95 = pneg %p89
      %p96 = scmp.eq.s32.totalorder %s12, 1
      %p97 = por %p95, %p96
      %p98 = scmp.ne.s32.totalorder %s90, %s93
      %p99 = scmp.eq.s32.totalorder %s12, 0
      %p100 = por %p98, %p99
      %p101 = scmp.ne.s32.totalorder %s90, %s93
      %p102 = scmp.eq.s32.totalorder %s17, 1
      %p103 = por %p101, %p102
      %p104 = scmp.ne.s32.totalorder %s93, %s94
      %p105 = scmp.eq.s32.totalorder %s17, 0
      %p106 = por %p104, %p105
      %p107 = scmp.ne.s32.totalorder %s93, %s94
      %p108 = scmp.eq.s32.totalorder %s18, 1
      %p109 = por %p107, %p108
      %p111 = scmp.ne.s32.totalorder %s94, %s110
      %p112 = scmp.eq.s32.totalorder %s18, 0
      %p113 = por %p111, %p112
      %p114 = scmp.le.s32.totalorder 1, %s12
      %p115 = scmp.lt.s32.totalorder %s12, 3
      %p116 = pnand %p114, %p115
      %p117 = pneg %p116
      // Predicated region
      $region9: #{tpu_custom_call.1} parent=5 // pred_check
        _
      $region10: #{tpu_custom_call.1} parent=5 // pred_check_branch
        %119 = sbr.rel (%p116) target = $region12
      $region11: #{tpu_custom_call.1} parent=5 // pred_region
        %s120 = ssub.s32 %s12, 1
        // Predicated region
        $region13: #{tpu_custom_call.1} parent=11 // pred_check
          %p121 = pneg %p59
        $region14: #{tpu_custom_call.1} parent=11 // pred_check_branch
          %123 = sbr.rel (%p121) target = $region16
        $region15: #{tpu_custom_call.1} parent=11 // pred_region
          _
        $region16: #{tpu_custom_call.1} parent=11 // pred_fallthru
          _
        // Predicated region
        $region17: #{tpu_custom_call.1} parent=11 // pred_check
          %p124 = pneg %p80
        $region18: #{tpu_custom_call.1} parent=11 // pred_check_branch
          %126 = sbr.rel (%p124) target = $region20
        $region19: #{tpu_custom_call.1} parent=11 // pred_region
          _
        $region20: #{tpu_custom_call.1} parent=11 // pred_fallthru
          _
      $region12: #{tpu_custom_call.1} parent=5 // pred_fallthru
        _
      %p127 = scmp.lt.s32.totalorder %s12, 2
      // Predicated region
      $region21: #{tpu_custom_call.1} parent=5 // pred_check
        %p128 = pneg %p127
      $region22: #{tpu_custom_call.1} parent=5 // pred_check_branch
        %130 = sbr.rel (%p128) target = $region24
      $region23: #{tpu_custom_call.1} parent=5 // pred_region
        // Predicated region
        $region25: #{tpu_custom_call.1} parent=23 // pred_check
          %p131 = pneg %p32
        $region26: #{tpu_custom_call.1} parent=23 // pred_check_branch
          %133 = sbr.rel (%p131) target = $region28
        $region27: #{tpu_custom_call.1} parent=23 // pred_region
          %s134 = smul.u32 32, %s12
          %p135 = scmp.lt.s32.totalorder %s134, 63
          %s136 = scalar_select %p135, %s134, 63
          %s137 = smul.addr %s136, 4
          %s138 = scalar_lea.vmem %s0, %s137
          %s139 = smul.u32 32, %s12
        $region28: #{tpu_custom_call.1} parent=23 // pred_fallthru
          _
      $region24: #{tpu_custom_call.1} parent=5 // pred_fallthru
        _
      %p140 = scmp.le.s32.totalorder 1, %s12
      %p141 = scmp.lt.s32.totalorder %s12, 3
      %p142 = pnand %p140, %p141
      %p143 = pneg %p142
      // Predicated region
      $region29: #{tpu_custom_call.1} parent=5 // pred_check
        _
      $region30: #{tpu_custom_call.1} parent=5 // pred_check_branch
        %145 = sbr.rel (%p142) target = $region32
      $region31: #{tpu_custom_call.1} parent=5 // pred_region
        %s146 = ssub.s32 %s12, 1
        %s147 = smul.u32 32, %s17
        %p148 = scmp.lt.s32.totalorder %s147, 63
        %s149 = scalar_select %p148, %s147, 63
        %s150 = smul.addr %s149, 4
        %s151 = scalar_lea.vmem %s0, %s150
        %p152 = pneg %p38
        %p153 = pneg %p35
        %p154 = pneg %p59
        %p155 = pneg %p56
        %p156 = pneg %p80
        %p157 = pneg %p77
        %p158 = pneg %p106
        %p159 = pneg %p103
        %s160 = sand.u32 %s93, 1
        %s161 = scalar_lea.sflag [#allocation3], %s160
        %s162 = sand.u32 %s93, 1
        %s163 = smul.addr %s162, 128
        %s164 = scalar_lea.vmem [#allocation2], %s163
        %s165 = smul.u32 32, %s17
        %p166 = scmp.lt.s32.totalorder %s165, 63
        %s167 = scalar_select %p166, %s165, 63
        %s168 = smul.addr %s167, 4
        %s169 = scalar_lea.vmem %s0, %s168
        %s170 = smul.u32 32, %s17
        %s171 = smul.u32 32, %s17
        %v173 = vld [vmem:[%s169] sm:$0xf]
        %v174 = vld [vmem:[%s169 + $0x4] sm:$0xf]
        %v175 = vld [vmem:[%s169 + $0x8] sm:$0xf]
        %v176 = vld [vmem:[%s169 + $0xc] sm:$0xf]
        %v177 = vld [vmem:[%s169 + $0x10] sm:$0xf]
        %v178 = vld [vmem:[%s169 + $0x14] sm:$0xf]
        %v179 = vld [vmem:[%s169 + $0x18] sm:$0xf]
        %v180 = vld [vmem:[%s169 + $0x1c] sm:$0xf]
        %v181 = vld [vmem:[%s169 + $0x20] sm:$0xf]
        %v182 = vld [vmem:[%s169 + $0x24] sm:$0xf]
        %v183 = vld [vmem:[%s169 + $0x28] sm:$0xf]
        %v184 = vld [vmem:[%s169 + $0x2c] sm:$0xf]
        %v185 = vld [vmem:[%s169 + $0x30] sm:$0xf]
        %v186 = vld [vmem:[%s169 + $0x34] sm:$0xf]
        %v187 = vld [vmem:[%s169 + $0x38] sm:$0xf]
        %v188 = vld [vmem:[%s169 + $0x3c] sm:$0xf]
        %v189 = vld [vmem:[%s169 + $0x40] sm:$0xf]
        %v190 = vld [vmem:[%s169 + $0x44] sm:$0xf]
        %v191 = vld [vmem:[%s169 + $0x48] sm:$0xf]
        %v192 = vld [vmem:[%s169 + $0x4c] sm:$0xf]
        %v193 = vld [vmem:[%s169 + $0x50] sm:$0xf]
        %v194 = vld [vmem:[%s169 + $0x54] sm:$0xf]
        %v195 = vld [vmem:[%s169 + $0x58] sm:$0xf]
        %v196 = vld [vmem:[%s169 + $0x5c] sm:$0xf]
        %v197 = vld [vmem:[%s169 + $0x60] sm:$0xf]
        %v198 = vld [vmem:[%s169 + $0x64] sm:$0xf]
        %v199 = vld [vmem:[%s169 + $0x68] sm:$0xf]
        %v200 = vld [vmem:[%s169 + $0x6c] sm:$0xf]
        %v201 = vld [vmem:[%s169 + $0x70] sm:$0xf]
        %v202 = vld [vmem:[%s169 + $0x74] sm:$0xf]
        %v203 = vld [vmem:[%s169 + $0x78] sm:$0xf]
        %v204 = vld [vmem:[%s169 + $0x7c] sm:$0xf]
        %v205 = vld [vmem:[%s1] sm:$0x3]
        %v206 = vld [vmem:[%s2] sm:$0x1]
        %v208 = vlaneseq
        %v209 = vshrl.u32 %v208, 7
        %v210 = vsub.s32 0, %v209
        %v211 = vrot.slane %v206, %v210
        %v245 = vunpack.c.l.b16 %v173
        %v246 = vunpack.c.l.b16 %v174
        %v247 = vunpack.c.l.b16 %v175
        %v248 = vunpack.c.l.b16 %v176
        %v249 = vunpack.c.l.b16 %v177
        %v250 = vunpack.c.l.b16 %v178
        %v251 = vunpack.c.l.b16 %v179
        %v252 = vunpack.c.l.b16 %v180
        %v253 = vunpack.c.l.b16 %v181
        %v254 = vunpack.c.l.b16 %v182
        %v255 = vunpack.c.l.b16 %v183
        %v256 = vunpack.c.l.b16 %v184
        %v257 = vunpack.c.l.b16 %v185
        %v258 = vunpack.c.l.b16 %v186
        %v259 = vunpack.c.l.b16 %v187
        %v260 = vunpack.c.l.b16 %v188
        %v261 = vunpack.c.l.b16 %v189
        %v262 = vunpack.c.l.b16 %v190
        %v263 = vunpack.c.l.b16 %v191
        %v264 = vunpack.c.l.b16 %v192
        %v265 = vunpack.c.l.b16 %v193
        %v266 = vunpack.c.l.b16 %v194
        %v267 = vunpack.c.l.b16 %v195
        %v268 = vunpack.c.l.b16 %v196
        %v269 = vunpack.c.l.b16 %v197
        %v270 = vunpack.c.l.b16 %v198
        %v271 = vunpack.c.l.b16 %v199
        %v272 = vunpack.c.l.b16 %v200
        %v273 = vunpack.c.l.b16 %v201
        %v274 = vunpack.c.l.b16 %v202
        %v275 = vunpack.c.l.b16 %v203
        %v276 = vunpack.c.l.b16 %v204
        %v277 = vpack.c.b16 %v246, %v245
        %v278 = vpack.c.b16 %v248, %v247
        %v279 = vpack.c.b16 %v250, %v249
        %v280 = vpack.c.b16 %v252, %v251
        %v281 = vpack.c.b16 %v254, %v253
        %v282 = vpack.c.b16 %v256, %v255
        %v283 = vpack.c.b16 %v258, %v257
        %v284 = vpack.c.b16 %v260, %v259
        %v285 = vpack.c.b16 %v262, %v261
        %v286 = vpack.c.b16 %v264, %v263
        %v287 = vpack.c.b16 %v266, %v265
        %v288 = vpack.c.b16 %v268, %v267
        %v289 = vpack.c.b16 %v270, %v269
        %v290 = vpack.c.b16 %v272, %v271
        %v291 = vpack.c.b16 %v274, %v273
        %v292 = vpack.c.b16 %v276, %v275
        %vm293 = vcmask 31744
        %v295 = vsel %vm293, %v277, 0
        %v298 = vsel %vm293, %v278, 0
        %v301 = vsel %vm293, %v279, 0
        %v304 = vsel %vm293, %v280, 0
        %v307 = vsel %vm293, %v281, 0
        %v310 = vsel %vm293, %v282, 0
        %v313 = vsel %vm293, %v283, 0
        %v316 = vsel %vm293, %v284, 0
        %v319 = vsel %vm293, %v285, 0
        %v322 = vsel %vm293, %v286, 0
        %v325 = vsel %vm293, %v287, 0
        %v328 = vsel %vm293, %v288, 0
        %v331 = vsel %vm293, %v289, 0
        %v334 = vsel %vm293, %v290, 0
        %v337 = vsel %vm293, %v291, 0
        %v340 = vsel %vm293, %v292, 0
        %vm342 = vcmask 1041408
        %v344 = vsel %vm342, %v205, 0
        %346 = vmatprep.subr.bf16.mxu0 0
        %347 = vmatpush1.bf16.msra.mxu0 %v344
        %348 = vmatprep.subr.bf16.mxu0 0
        %349 = vmatpush1.bf16.msra.mxu0 0
        %350 = vmatprep.subr.bf16.mxu0 0
        %351 = vmatpush1.bf16.msra.mxu0 0
        %352 = vmatprep.subr.bf16.mxu0 0
        %353 = vmatpush1.bf16.msra.mxu0 0
        %354 = vmatprep.subr.bf16.mxu0 0
        %355 = vmatpush1.bf16.msra.mxu0 0
        %356 = vmatprep.subr.bf16.mxu0 0
        %357 = vmatpush1.bf16.msra.mxu0 0
        %358 = vmatprep.subr.bf16.mxu0 0
        %359 = vmatpush1.bf16.msra.mxu0 0
        %360 = vmatprep.subr.bf16.mxu0 0
        %361 = vmatpush1.bf16.msra.mxu0 0
        %362 = vmatprep.subr.bf16.mxu0 0
        %363 = vmatpush1.bf16.msra.mxu0 0
        %364 = vmatprep.subr.bf16.mxu0 0
        %365 = vmatpush1.bf16.msra.mxu0 0
        %366 = vmatprep.subr.bf16.mxu0 0
        %367 = vmatpush1.bf16.msra.mxu0 0
        %368 = vmatprep.subr.bf16.mxu0 0
        %369 = vmatpush1.bf16.msra.mxu0 0
        %370 = vmatprep.subr.bf16.mxu0 0
        %371 = vmatpush1.bf16.msra.mxu0 0
        %372 = vmatprep.subr.bf16.mxu0 0
        %373 = vmatpush1.bf16.msra.mxu0 0
        %374 = vmatprep.subr.bf16.mxu0 0
        %375 = vmatpush1.bf16.msra.mxu0 0
        %376 = vmatprep.subr.bf16.mxu0 0
        %377 = vmatpush1.bf16.msra.mxu0 0
        %378 = vmatprep.mubr.bf16.mxu0 0
        %379 = vmatmul.mubr.bf16.gmra.mrb[0].mxu0 %v295
        %v380 = vpop.f32.mrb[0].mxu0
        %v381 = vadd.f32 %v211, %v380
        %v382 = vpop.f32.mrb[0].mxu0
        %v383 = vpop.f32.mrb[0].mxu0
        %v384 = vadd.f32 %v211, %v383
        %v385 = vpop.f32.mrb[0].mxu0
        %386 = vmatprep.mubr.bf16.mxu0 0
        %387 = vmatmul.mubr.bf16.gmra.mrb[0].mxu0 %v298
        %v388 = vpop.f32.mrb[0].mxu0
        %v389 = vadd.f32 %v211, %v388
        %v390 = vpop.f32.mrb[0].mxu0
        %v391 = vpop.f32.mrb[0].mxu0
        %v392 = vadd.f32 %v211, %v391
        %v393 = vpop.f32.mrb[0].mxu0
        %394 = vmatprep.mubr.bf16.mxu0 0
        %395 = vmatmul.mubr.bf16.gmra.mrb[0].mxu0 %v301
        %v396 = vpop.f32.mrb[0].mxu0
        %v397 = vadd.f32 %v211, %v396
        %v398 = vpop.f32.mrb[0].mxu0
        %v399 = vpop.f32.mrb[0].mxu0
        %v400 = vadd.f32 %v211, %v399
        %v401 = vpop.f32.mrb[0].mxu0
        %402 = vmatprep.mubr.bf16.mxu0 0
        %403 = vmatmul.mubr.bf16.gmra.mrb[0].mxu0 %v304
        %v404 = vpop.f32.mrb[0].mxu0
        %v405 = vadd.f32 %v211, %v404
        %v406 = vpop.f32.mrb[0].mxu0
        %v407 = vpop.f32.mrb[0].mxu0
        %v408 = vadd.f32 %v211, %v407
        %v409 = vpop.f32.mrb[0].mxu0
        %410 = vmatprep.mubr.bf16.mxu0 0
        %411 = vmatmul.mubr.bf16.gmra.mrb[0].mxu0 %v307
        %v412 = vpop.f32.mrb[0].mxu0
        %v413 = vadd.f32 %v211, %v412
        %v414 = vpop.f32.mrb[0].mxu0
        %v415 = vpop.f32.mrb[0].mxu0
        %v416 = vadd.f32 %v211, %v415
        %v417 = vpop.f32.mrb[0].mxu0
        %418 = vmatprep.mubr.bf16.mxu0 0
        %419 = vmatmul.mubr.bf16.gmra.mrb[0].mxu0 %v310
        %v420 = vpop.f32.mrb[0].mxu0
        %v421 = vadd.f32 %v211, %v420
        %v422 = vpop.f32.mrb[0].mxu0
        %v423 = vpop.f32.mrb[0].mxu0
        %v424 = vadd.f32 %v211, %v423
        %v425 = vpop.f32.mrb[0].mxu0
        %426 = vmatprep.mubr.bf16.mxu0 0
        %427 = vmatmul.mubr.bf16.gmra.mrb[0].mxu0 %v313
        %v428 = vpop.f32.mrb[0].mxu0
        %v429 = vadd.f32 %v211, %v428
        %v430 = vpop.f32.mrb[0].mxu0
        %v431 = vpop.f32.mrb[0].mxu0
        %v432 = vadd.f32 %v211, %v431
        %v433 = vpop.f32.mrb[0].mxu0
        %434 = vmatprep.mubr.bf16.mxu0 0
        %435 = vmatmul.mubr.bf16.gmra.mrb[0].mxu0 %v316
        %v436 = vpop.f32.mrb[0].mxu0
        %v437 = vadd.f32 %v211, %v436
        %v438 = vpop.f32.mrb[0].mxu0
        %v439 = vpop.f32.mrb[0].mxu0
        %v440 = vadd.f32 %v211, %v439
        %v441 = vpop.f32.mrb[0].mxu0
        %442 = vmatprep.mubr.bf16.mxu0 0
        %443 = vmatmul.mubr.bf16.gmra.mrb[0].mxu0 %v319
        %v444 = vpop.f32.mrb[0].mxu0
        %v445 = vadd.f32 %v211, %v444
        %v446 = vpop.f32.mrb[0].mxu0
        %v447 = vpop.f32.mrb[0].mxu0
        %v448 = vadd.f32 %v211, %v447
        %v449 = vpop.f32.mrb[0].mxu0
        %450 = vmatprep.mubr.bf16.mxu0 0
        %451 = vmatmul.mubr.bf16.gmra.mrb[0].mxu0 %v322
        %v452 = vpop.f32.mrb[0].mxu0
        %v453 = vadd.f32 %v211, %v452
        %v454 = vpop.f32.mrb[0].mxu0
        %v455 = vpop.f32.mrb[0].mxu0
        %v456 = vadd.f32 %v211, %v455
        %v457 = vpop.f32.mrb[0].mxu0
        %458 = vmatprep.mubr.bf16.mxu0 0
        %459 = vmatmul.mubr.bf16.gmra.mrb[0].mxu0 %v325
        %v460 = vpop.f32.mrb[0].mxu0
        %v461 = vadd.f32 %v211, %v460
        %v462 = vpop.f32.mrb[0].mxu0
        %v463 = vpop.f32.mrb[0].mxu0
        %v464 = vadd.f32 %v211, %v463
        %v465 = vpop.f32.mrb[0].mxu0
        %466 = vmatprep.mubr.bf16.mxu0 0
        %467 = vmatmul.mubr.bf16.gmra.mrb[0].mxu0 %v328
        %v468 = vpop.f32.mrb[0].mxu0
        %v469 = vadd.f32 %v211, %v468
        %v470 = vpop.f32.mrb[0].mxu0
        %v471 = vpop.f32.mrb[0].mxu0
        %v472 = vadd.f32 %v211, %v471
        %v473 = vpop.f32.mrb[0].mxu0
        %474 = vmatprep.mubr.bf16.mxu0 0
        %475 = vmatmul.mubr.bf16.gmra.mrb[0].mxu0 %v331
        %v476 = vpop.f32.mrb[0].mxu0
        %v477 = vadd.f32 %v211, %v476
        %v478 = vpop.f32.mrb[0].mxu0
        %v479 = vpop.f32.mrb[0].mxu0
        %v480 = vadd.f32 %v211, %v479
        %v481 = vpop.f32.mrb[0].mxu0
        %482 = vmatprep.mubr.bf16.mxu0 0
        %483 = vmatmul.mubr.bf16.gmra.mrb[0].mxu0 %v334
        %v484 = vpop.f32.mrb[0].mxu0
        %v485 = vadd.f32 %v211, %v484
        %v486 = vpop.f32.mrb[0].mxu0
        %v487 = vpop.f32.mrb[0].mxu0
        %v488 = vadd.f32 %v211, %v487
        %v489 = vpop.f32.mrb[0].mxu0
        %490 = vmatprep.mubr.bf16.mxu0 0
        %491 = vmatmul.mubr.bf16.gmra.mrb[0].mxu0 %v337
        %v492 = vpop.f32.mrb[0].mxu0
        %v493 = vadd.f32 %v211, %v492
        %v494 = vpop.f32.mrb[0].mxu0
        %v495 = vpop.f32.mrb[0].mxu0
        %v496 = vadd.f32 %v211, %v495
        %v497 = vpop.f32.mrb[0].mxu0
        %498 = vmatprep.mubr.bf16.mxu0 0
        %499 = vmatmul.mubr.bf16.gmra.mrb[0].mxu0 %v340
        %v500 = vpop.f32.mrb[0].mxu0
        %v501 = vadd.f32 %v211, %v500
        %v502 = vpop.f32.mrb[0].mxu0
        %v503 = vpop.f32.mrb[0].mxu0
        %v504 = vadd.f32 %v211, %v503
        %v505 = vpop.f32.mrb[0].mxu0
        %506 = vdwg.mxu0
        %v507 = vmax.f32 %v381, 0.0
        %v508 = vmax.f32 %v384, 0.0
        %v509 = vmax.f32 %v389, 0.0
        %v510 = vmax.f32 %v392, 0.0
        %v511 = vmax.f32 %v397, 0.0
        %v512 = vmax.f32 %v400, 0.0
        %v513 = vmax.f32 %v405, 0.0
        %v514 = vmax.f32 %v408, 0.0
        %v515 = vmax.f32 %v413, 0.0
        %v516 = vmax.f32 %v416, 0.0
        %v517 = vmax.f32 %v421, 0.0
        %v518 = vmax.f32 %v424, 0.0
        %v519 = vmax.f32 %v429, 0.0
        %v520 = vmax.f32 %v432, 0.0
        %v521 = vmax.f32 %v437, 0.0
        %v522 = vmax.f32 %v440, 0.0
        %v523 = vmax.f32 %v445, 0.0
        %v524 = vmax.f32 %v448, 0.0
        %v525 = vmax.f32 %v453, 0.0
        %v526 = vmax.f32 %v456, 0.0
        %v527 = vmax.f32 %v461, 0.0
        %v528 = vmax.f32 %v464, 0.0
        %v529 = vmax.f32 %v469, 0.0
        %v530 = vmax.f32 %v472, 0.0
        %v531 = vmax.f32 %v477, 0.0
        %v532 = vmax.f32 %v480, 0.0
        %v533 = vmax.f32 %v485, 0.0
        %v534 = vmax.f32 %v488, 0.0
        %v535 = vmax.f32 %v493, 0.0
        %v536 = vmax.f32 %v496, 0.0
        %v537 = vmax.f32 %v501, 0.0
        %v538 = vmax.f32 %v504, 0.0
        %v539 = vpack.c.bf16 %v508, %v507
        %v540 = vpack.c.bf16 %v510, %v509
        %v541 = vpack.c.bf16 %v512, %v511
        %v542 = vpack.c.bf16 %v514, %v513
        %v543 = vpack.c.bf16 %v516, %v515
        %v544 = vpack.c.bf16 %v518, %v517
        %v545 = vpack.c.bf16 %v520, %v519
        %v546 = vpack.c.bf16 %v522, %v521
        %v547 = vpack.c.bf16 %v524, %v523
        %v548 = vpack.c.bf16 %v526, %v525
        %v549 = vpack.c.bf16 %v528, %v527
        %v550 = vpack.c.bf16 %v530, %v529
        %v551 = vpack.c.bf16 %v532, %v531
        %v552 = vpack.c.bf16 %v534, %v533
        %v553 = vpack.c.bf16 %v536, %v535
        %v554 = vpack.c.bf16 %v538, %v537
        %v571 = vunpack.c.l.b16 %v539
        %v572 = vunpack.c.h.b16 %v539
        %v573 = vunpack.c.l.b16 %v540
        %v574 = vunpack.c.h.b16 %v540
        %v575 = vunpack.c.l.b16 %v541
        %v576 = vunpack.c.h.b16 %v541
        %v577 = vunpack.c.l.b16 %v542
        %v578 = vunpack.c.h.b16 %v542
        %v579 = vunpack.c.l.b16 %v543
        %v580 = vunpack.c.h.b16 %v543
        %v581 = vunpack.c.l.b16 %v544
        %v582 = vunpack.c.h.b16 %v544
        %v583 = vunpack.c.l.b16 %v545
        %v584 = vunpack.c.h.b16 %v545
        %v585 = vunpack.c.l.b16 %v546
        %v586 = vunpack.c.h.b16 %v546
        %v587 = vunpack.c.l.b16 %v547
        %v588 = vunpack.c.h.b16 %v547
        %v589 = vunpack.c.l.b16 %v548
        %v590 = vunpack.c.h.b16 %v548
        %v591 = vunpack.c.l.b16 %v549
        %v592 = vunpack.c.h.b16 %v549
        %v593 = vunpack.c.l.b16 %v550
        %v594 = vunpack.c.h.b16 %v550
        %v595 = vunpack.c.l.b16 %v551
        %v596 = vunpack.c.h.b16 %v551
        %v597 = vunpack.c.l.b16 %v552
        %v598 = vunpack.c.h.b16 %v552
        %v599 = vunpack.c.l.b16 %v553
        %v600 = vunpack.c.h.b16 %v553
        %v601 = vunpack.c.l.b16 %v554
        %v602 = vunpack.c.h.b16 %v554
        %v603 = vpack.c.b16 %v571, %v571
        %v604 = vpack.c.b16 %v572, %v572
        %v605 = vpack.c.b16 %v573, %v573
        %v606 = vpack.c.b16 %v574, %v574
        %v607 = vpack.c.b16 %v575, %v575
        %v608 = vpack.c.b16 %v576, %v576
        %v609 = vpack.c.b16 %v577, %v577
        %v610 = vpack.c.b16 %v578, %v578
        %v611 = vpack.c.b16 %v579, %v579
        %v612 = vpack.c.b16 %v580, %v580
        %v613 = vpack.c.b16 %v581, %v581
        %v614 = vpack.c.b16 %v582, %v582
        %v615 = vpack.c.b16 %v583, %v583
        %v616 = vpack.c.b16 %v584, %v584
        %v617 = vpack.c.b16 %v585, %v585
        %v618 = vpack.c.b16 %v586, %v586
        %v619 = vpack.c.b16 %v587, %v587
        %v620 = vpack.c.b16 %v588, %v588
        %v621 = vpack.c.b16 %v589, %v589
        %v622 = vpack.c.b16 %v590, %v590
        %v623 = vpack.c.b16 %v591, %v591
        %v624 = vpack.c.b16 %v592, %v592
        %v625 = vpack.c.b16 %v593, %v593
        %v626 = vpack.c.b16 %v594, %v594
        %v627 = vpack.c.b16 %v595, %v595
        %v628 = vpack.c.b16 %v596, %v596
        %v629 = vpack.c.b16 %v597, %v597
        %v630 = vpack.c.b16 %v598, %v598
        %v631 = vpack.c.b16 %v599, %v599
        %v632 = vpack.c.b16 %v600, %v600
        %v633 = vpack.c.b16 %v601, %v601
        %v634 = vpack.c.b16 %v602, %v602
        %667 = vst [vmem:[%s164] sm:$0xf] %v603
        %668 = vst [vmem:[%s164 + $0x4] sm:$0xf] %v604
        %669 = vst [vmem:[%s164 + $0x8] sm:$0xf] %v605
        %670 = vst [vmem:[%s164 + $0xc] sm:$0xf] %v606
        %671 = vst [vmem:[%s164 + $0x10] sm:$0xf] %v607
        %672 = vst [vmem:[%s164 + $0x14] sm:$0xf] %v608
        %673 = vst [vmem:[%s164 + $0x18] sm:$0xf] %v609
        %674 = vst [vmem:[%s164 + $0x1c] sm:$0xf] %v610
        %675 = vst [vmem:[%s164 + $0x20] sm:$0xf] %v611
        %676 = vst [vmem:[%s164 + $0x24] sm:$0xf] %v612
        %677 = vst [vmem:[%s164 + $0x28] sm:$0xf] %v613
        %678 = vst [vmem:[%s164 + $0x2c] sm:$0xf] %v614
        %679 = vst [vmem:[%s164 + $0x30] sm:$0xf] %v615
        %680 = vst [vmem:[%s164 + $0x34] sm:$0xf] %v616
        %681 = vst [vmem:[%s164 + $0x38] sm:$0xf] %v617
        %682 = vst [vmem:[%s164 + $0x3c] sm:$0xf] %v618
        %683 = vst [vmem:[%s164 + $0x40] sm:$0xf] %v619
        %684 = vst [vmem:[%s164 + $0x44] sm:$0xf] %v620
        %685 = vst [vmem:[%s164 + $0x48] sm:$0xf] %v621
        %686 = vst [vmem:[%s164 + $0x4c] sm:$0xf] %v622
        %687 = vst [vmem:[%s164 + $0x50] sm:$0xf] %v623
        %688 = vst [vmem:[%s164 + $0x54] sm:$0xf] %v624
        %689 = vst [vmem:[%s164 + $0x58] sm:$0xf] %v625
        %690 = vst [vmem:[%s164 + $0x5c] sm:$0xf] %v626
        %691 = vst [vmem:[%s164 + $0x60] sm:$0xf] %v627
        %692 = vst [vmem:[%s164 + $0x64] sm:$0xf] %v628
        %693 = vst [vmem:[%s164 + $0x68] sm:$0xf] %v629
        %694 = vst [vmem:[%s164 + $0x6c] sm:$0xf] %v630
        %695 = vst [vmem:[%s164 + $0x70] sm:$0xf] %v631
        %696 = vst [vmem:[%s164 + $0x74] sm:$0xf] %v632
        %697 = vst [vmem:[%s164 + $0x78] sm:$0xf] %v633
        %698 = vst [vmem:[%s164 + $0x7c] sm:$0xf] %v634
        %s699 = sand.u32 %s93, 1
        %s700 = scalar_lea.sflag [#allocation3], %s699
        %s701 = sand.u32 %s93, 1
        %s702 = smul.addr %s701, 128
        %s703 = scalar_lea.vmem [#allocation2], %s702
        // Predicated region
        $region33: #{tpu_custom_call.1} parent=31 // pred_check
          %p704 = pneg %p103
        $region34: #{tpu_custom_call.1} parent=31 // pred_check_branch
          %706 = sbr.rel (%p704) target = $region36
        $region35: #{tpu_custom_call.1} parent=31 // pred_region
          %s707 = smul.u32 32, %s17
          %s709 = ssub.s32 2048, 2048
          %710 = vsyncadd %s700, %s709
          %s711 = smul.addr %s707, 64
          %s712 = scalar_lea.hbm %s3, %s711
          %s713 = sshll.u32 %s703, 4
          %s714 = int_to_ptr.vmem [resolvable:$true] %s713
          %719 = dma.vmem_to_hbm [thread:$0]  %s714, 2048, %s712, %s700, 64, 64, 4
        $region36: #{tpu_custom_call.1} parent=31 // pred_fallthru
          _
      $region32: #{tpu_custom_call.1} parent=5 // pred_fallthru
        _
      %p720 = scmp.le.s32.totalorder 2, %s12
      // Predicated region
      $region37: #{tpu_custom_call.1} parent=5 // pred_check
        %p721 = pneg %p720
      $region38: #{tpu_custom_call.1} parent=5 // pred_check_branch
        %723 = sbr.rel (%p721) target = $region40
      $region39: #{tpu_custom_call.1} parent=5 // pred_region
        %s724 = ssub.s32 %s12, 2
        // Predicated region
        $region41: #{tpu_custom_call.1} parent=39 // pred_check
          %p725 = pneg %p109
        $region42: #{tpu_custom_call.1} parent=39 // pred_check_branch
          %727 = sbr.rel (%p725) target = $region44
        $region43: #{tpu_custom_call.1} parent=39 // pred_region
          %s728 = sand.u32 %s94, 1
          %s729 = scalar_lea.sflag [#allocation3], %s728
          %s730 = sand.u32 %s94, 1
          %s731 = smul.addr %s730, 128
          %s732 = scalar_lea.vmem [#allocation2], %s731
          %733 = dma.done %s729, 2048
        $region44: #{tpu_custom_call.1} parent=39 // pred_fallthru
          _
      $region40: #{tpu_custom_call.1} parent=5 // pred_fallthru
        _
    $region6: #{tpu_custom_call.1} parent=1 // loop_footer
      %s16 = sadd.s32 1, %s12
    $region7: #{tpu_custom_call.1} parent=1 // loop_footer_branch
      %11 = sbr.rel target = $region3
    $region8: #{tpu_custom_call.1} parent=1 // loop_exit
      _
    %734 = vsyncpa [#allocation3], 1
    %s735 = scalar_lea.sflag [#allocation3], 1
    %736 = vsyncpa %s735, 1

</llo_original>
